<compile_context>
chip_gen: v5e
topology: v5e:2x2
jax: 0.10.0
libtpu: 0.0.40
codegen_flags: <defaults>
</compile_context>

<pallas_src>
import jax
import jax.numpy as jnp
from jax.experimental import pallas as pl
from jax.experimental.pallas import tpu as pltpu


N_IN = 4
N_NEURONS = 20
N_OUT = 2


def _mlp_kernel(x_ref, w0_ref, b0_ref, w1_ref, b1_ref, w2_ref, b2_ref,
                w3_ref, b3_ref, out_ref):
    # x tile is (N_IN, bm): features on sublanes, batch on lanes.
    x = x_ref[...]

    # h0 + ReLU                                  (20, bm)
    h = jnp.dot(w0_ref[...], x, preferred_element_type=jnp.float32)
    h = jnp.maximum(h + b0_ref[...], 0.0)
    # hidden layer 1 + ReLU                      (20, bm)
    h = jnp.dot(w1_ref[...], h, preferred_element_type=jnp.float32)
    h = jnp.maximum(h + b1_ref[...], 0.0)
    # hidden layer 2 + ReLU                      (20, bm)
    h = jnp.dot(w2_ref[...], h, preferred_element_type=jnp.float32)
    h = jnp.maximum(h + b2_ref[...], 0.0)
    # raw_out                                    (2, bm)
    logits = jnp.dot(w3_ref[...], h, preferred_element_type=jnp.float32)
    logits = logits + b3_ref[...]

    # LogSoftmax over the 2-class (sublane) axis, done as explicit pairwise
    # ops on the two rows — no cross-lane (XLU) reduction needed.
    l0 = logits[0:1, :]
    l1 = logits[1:2, :]
    m = jnp.maximum(l0, l1)
    lse = m + jnp.log(jnp.exp(l0 - m) + jnp.exp(l1 - m))
    out_ref[...] = (logits - lse).astype(out_ref.dtype)


def second_net_forward(x, params, *, bm=1024):
    """SecondNetStruct forward pass with a single Pallas kernel.

    Args:
      x: (B, 4) float32 input (any B; padded internally to a lane multiple).
      params: dict with w0..w3 of shape (out, in) and b0..b3 of shape (out, 1).
      bm: batch tile size (lane dimension). Rounded to a multiple of 128 and
          capped at the padded batch. ~1024-8192 recommended for large B.
    Returns:
      (B, 2) float32 log-probabilities.
    """
    B = x.shape[0]

    # Lane dimension must be a multiple of 128; cap the tile at the padded batch.
    bm = max(128, (bm // 128) * 128)
    bm = min(bm, pl.cdiv(B, 128) * 128)
    padded_B = pl.cdiv(B, bm) * bm
    num_tiles = padded_B // bm
    # NOTE(v7x): for large B, num_tiles >= 2 lets the "parallel" grid axis be
    # sharded across both TensorCores.

    # Transpose to batch-on-lanes and zero-pad the batch axis.
    x_t = jnp.zeros((N_IN, padded_B), jnp.float32).at[:, :B].set(x.T)

    full = lambda shape: pl.BlockSpec(shape, lambda i: (0, 0))

    grid_spec = pltpu.PrefetchScalarGridSpec(
        num_scalar_prefetch=0,
        grid=(num_tiles,),
        in_specs=[
            pl.BlockSpec((N_IN, bm), lambda i: (0, i)),            # x tile
            full((N_NEURONS, N_IN)), full((N_NEURONS, 1)),         # h0
            full((N_NEURONS, N_NEURONS)), full((N_NEURONS, 1)),    # h1
            full((N_NEURONS, N_NEURONS)), full((N_NEURONS, 1)),    # h2
            full((N_OUT, N_NEURONS)), full((N_OUT, 1)),            # raw_out
        ],
        out_specs=pl.BlockSpec((N_OUT, bm), lambda i: (0, i)),
    )

    out_t = pl.pallas_call(
        _mlp_kernel,
        out_shape=jax.ShapeDtypeStruct((N_OUT, padded_B), jnp.float32),
        grid_spec=grid_spec,
        compiler_params=pltpu.CompilerParams(
            dimension_semantics=("parallel",)),
    )(x_t, params["w0"], params["b0"], params["w1"], params["b1"],
      params["w2"], params["b2"], params["w3"], params["b3"])

    # Back to the PyTorch (B, 2) layout; drop batch padding.
    return out_t.T[:B]


def init_params(key):
    """PyTorch-style init: U(-1/sqrt(fan_in), 1/sqrt(fan_in)).

    Weights stored as (out_features, in_features), biases as (out_features, 1).
    """
    dims = [(N_IN, N_NEURONS), (N_NEURONS, N_NEURONS),
            (N_NEURONS, N_NEURONS), (N_NEURONS, N_OUT)]
    params = {}
    for idx, (fan_in, fan_out) in enumerate(dims):
        key, kw, kb = jax.random.split(key, 3)
        bound = 1.0 / jnp.sqrt(float(fan_in))
        params[f"w{idx}"] = jax.random.uniform(
            kw, (fan_out, fan_in), jnp.float32, -bound, bound)
        params[f"b{idx}"] = jax.random.uniform(
            kb, (fan_out, 1), jnp.float32, -bound, bound)
    return params


def reference_forward(x, params):
    """Pure-JAX reference for correctness checking (standard (B, F) layout)."""
    h = jnp.maximum(x @ params["w0"].T + params["b0"][:, 0], 0.0)
    h = jnp.maximum(h @ params["w1"].T + params["b1"][:, 0], 0.0)
    h = jnp.maximum(h @ params["w2"].T + params["b2"][:, 0], 0.0)
    logits = h @ params["w3"].T + params["b3"][:, 0]
    return jax.nn.log_softmax(logits, axis=1)


if __name__ == "__main__":
    key = jax.random.PRNGKey(0)
    key, kx = jax.random.split(key)

    B = 8  # small demo batch; features fixed at 4 by the module
    x = jax.random.normal(kx, (B, N_IN), dtype=jnp.float32)
    params = init_params(key)

    out = second_net_forward(x, params)
    out = jax.block_until_ready(out)

    ref = reference_forward(x, params)
    assert out.shape == (B, N_OUT)
    assert jnp.allclose(out, ref, atol=1e-5, rtol=1e-5), "mismatch vs reference"

    print("KERNEL_OK")
</pallas_src>

<mosaic_0001>
module attributes {stable_mosaic.version = 11 : i64} {
  func.func @_mlp_kernel(%arg0: i32, %arg1: memref<4x128xf32, #tpu.memory_space<vmem>>, %arg2: memref<20x4xf32, #tpu.memory_space<vmem>>, %arg3: memref<20x1xf32, #tpu.memory_space<vmem>>, %arg4: memref<20x20xf32, #tpu.memory_space<vmem>>, %arg5: memref<20x1xf32, #tpu.memory_space<vmem>>, %arg6: memref<20x20xf32, #tpu.memory_space<vmem>>, %arg7: memref<20x1xf32, #tpu.memory_space<vmem>>, %arg8: memref<2x20xf32, #tpu.memory_space<vmem>>, %arg9: memref<2x1xf32, #tpu.memory_space<vmem>>, %arg10: memref<2x128xf32, #tpu.memory_space<vmem>>) attributes {dimension_semantics = [#tpu.dimension_semantics<parallel>], iteration_bounds = array<i64: 1>, scalar_prefetch = 0 : i64, scratch_operands = 0 : i64, tpu.core_type = #tpu.core_type<tc>, window_params = [{transform_indices = @transform_0, window_bounds = array<i64: 4, 128>}, {pipeline_mode = #tpu.pipeline_mode<synchronous>, transform_indices = @transform_1, window_bounds = array<i64: 20, 4>}, {pipeline_mode = #tpu.pipeline_mode<synchronous>, transform_indices = @transform_2, window_bounds = array<i64: 20, 1>}, {pipeline_mode = #tpu.pipeline_mode<synchronous>, transform_indices = @transform_3, window_bounds = array<i64: 20, 20>}, {pipeline_mode = #tpu.pipeline_mode<synchronous>, transform_indices = @transform_4, window_bounds = array<i64: 20, 1>}, {pipeline_mode = #tpu.pipeline_mode<synchronous>, transform_indices = @transform_5, window_bounds = array<i64: 20, 20>}, {pipeline_mode = #tpu.pipeline_mode<synchronous>, transform_indices = @transform_6, window_bounds = array<i64: 20, 1>}, {pipeline_mode = #tpu.pipeline_mode<synchronous>, transform_indices = @transform_7, window_bounds = array<i64: 2, 20>}, {pipeline_mode = #tpu.pipeline_mode<synchronous>, transform_indices = @transform_8, window_bounds = array<i64: 2, 1>}, {transform_indices = @transform_9, window_bounds = array<i64: 2, 128>}]} {
    %c0 = arith.constant 0 : index
    %c0_0 = arith.constant 0 : index
    %0 = vector.load %arg1[%c0, %c0_0] : memref<4x128xf32, #tpu.memory_space<vmem>>, vector<4x128xf32>
    %c0_1 = arith.constant 0 : index
    %c0_2 = arith.constant 0 : index
    %1 = vector.load %arg2[%c0_1, %c0_2] : memref<20x4xf32, #tpu.memory_space<vmem>>, vector<20x4xf32>
    %cst = arith.constant dense<0.000000e+00> : vector<20x128xf32>
    %2 = tpu.matmul %1, %0, %cst {dimension_numbers = #tpu.dot_dimension_numbers<[1], [0], [0], [1], [0, 0, 1, 1], [], []>} : vector<20x4xf32>, vector<4x128xf32>, vector<20x128xf32> -> vector<20x128xf32>
    %c0_3 = arith.constant 0 : index
    %c0_4 = arith.constant 0 : index
    %3 = vector.load %arg3[%c0_3, %c0_4] : memref<20x1xf32, #tpu.memory_space<vmem>>, vector<20x1xf32>
    %4 = vector.broadcast %3 : vector<20x1xf32> to vector<20x128xf32>
    %5 = arith.addf %2, %4 : vector<20x128xf32>
    %cst_5 = arith.constant 0.000000e+00 : f32
    %6 = vector.broadcast %cst_5 : f32 to vector<20x128xf32>
    %7 = arith.maximumf %5, %6 : vector<20x128xf32>
    %c0_6 = arith.constant 0 : index
    %c0_7 = arith.constant 0 : index
    %8 = vector.load %arg4[%c0_6, %c0_7] : memref<20x20xf32, #tpu.memory_space<vmem>>, vector<20x20xf32>
    %cst_8 = arith.constant dense<0.000000e+00> : vector<20x128xf32>
    %9 = tpu.matmul %8, %7, %cst_8 {dimension_numbers = #tpu.dot_dimension_numbers<[1], [0], [0], [1], [0, 0, 1, 1], [], []>} : vector<20x20xf32>, vector<20x128xf32>, vector<20x128xf32> -> vector<20x128xf32>
    %c0_9 = arith.constant 0 : index
    %c0_10 = arith.constant 0 : index
    %10 = vector.load %arg5[%c0_9, %c0_10] : memref<20x1xf32, #tpu.memory_space<vmem>>, vector<20x1xf32>
    %11 = vector.broadcast %10 : vector<20x1xf32> to vector<20x128xf32>
    %12 = arith.addf %9, %11 : vector<20x128xf32>
    %cst_11 = arith.constant 0.000000e+00 : f32
    %13 = vector.broadcast %cst_11 : f32 to vector<20x128xf32>
    %14 = arith.maximumf %12, %13 : vector<20x128xf32>
    %c0_12 = arith.constant 0 : index
    %c0_13 = arith.constant 0 : index
    %15 = vector.load %arg6[%c0_12, %c0_13] : memref<20x20xf32, #tpu.memory_space<vmem>>, vector<20x20xf32>
    %cst_14 = arith.constant dense<0.000000e+00> : vector<20x128xf32>
    %16 = tpu.matmul %15, %14, %cst_14 {dimension_numbers = #tpu.dot_dimension_numbers<[1], [0], [0], [1], [0, 0, 1, 1], [], []>} : vector<20x20xf32>, vector<20x128xf32>, vector<20x128xf32> -> vector<20x128xf32>
    %c0_15 = arith.constant 0 : index
    %c0_16 = arith.constant 0 : index
    %17 = vector.load %arg7[%c0_15, %c0_16] : memref<20x1xf32, #tpu.memory_space<vmem>>, vector<20x1xf32>
    %18 = vector.broadcast %17 : vector<20x1xf32> to vector<20x128xf32>
    %19 = arith.addf %16, %18 : vector<20x128xf32>
    %cst_17 = arith.constant 0.000000e+00 : f32
    %20 = vector.broadcast %cst_17 : f32 to vector<20x128xf32>
    %21 = arith.maximumf %19, %20 : vector<20x128xf32>
    %c0_18 = arith.constant 0 : index
    %c0_19 = arith.constant 0 : index
    %22 = vector.load %arg8[%c0_18, %c0_19] : memref<2x20xf32, #tpu.memory_space<vmem>>, vector<2x20xf32>
    %cst_20 = arith.constant dense<0.000000e+00> : vector<2x128xf32>
    %23 = tpu.matmul %22, %21, %cst_20 {dimension_numbers = #tpu.dot_dimension_numbers<[1], [0], [0], [1], [0, 0, 1, 1], [], []>} : vector<2x20xf32>, vector<20x128xf32>, vector<2x128xf32> -> vector<2x128xf32>
    %c0_21 = arith.constant 0 : index
    %c0_22 = arith.constant 0 : index
    %24 = vector.load %arg9[%c0_21, %c0_22] : memref<2x1xf32, #tpu.memory_space<vmem>>, vector<2x1xf32>
    %25 = vector.broadcast %24 : vector<2x1xf32> to vector<2x128xf32>
    %26 = arith.addf %23, %25 : vector<2x128xf32>
    %27 = vector.extract_strided_slice %26 {offsets = [0, 0], sizes = [1, 128], strides = [1, 1]} : vector<2x128xf32> to vector<1x128xf32>
    %28 = vector.extract_strided_slice %26 {offsets = [1, 0], sizes = [1, 128], strides = [1, 1]} : vector<2x128xf32> to vector<1x128xf32>
    %29 = arith.maximumf %27, %28 : vector<1x128xf32>
    %30 = arith.subf %27, %29 : vector<1x128xf32>
    %31 = math.exp %30 : vector<1x128xf32>
    %32 = arith.subf %28, %29 : vector<1x128xf32>
    %33 = math.exp %32 : vector<1x128xf32>
    %34 = arith.addf %31, %33 : vector<1x128xf32>
    %35 = math.log %34 : vector<1x128xf32>
    %36 = arith.addf %29, %35 : vector<1x128xf32>
    %37 = vector.broadcast %36 : vector<1x128xf32> to vector<2x128xf32>
    %38 = arith.subf %26, %37 : vector<2x128xf32>
    %c0_23 = arith.constant 0 : index
    %c0_24 = arith.constant 0 : index
    %39 = vector.load %arg10[%c0_23, %c0_24] : memref<2x128xf32, #tpu.memory_space<vmem>>, vector<2x128xf32>
    tpu.vector_store %arg10[%c0_23, %c0_24], %38 {strides = array<i32>} : memref<2x128xf32, #tpu.memory_space<vmem>>, vector<2x128xf32>,
    return
  }
  func.func @transform_0(%arg0: i32) -> (i32, i32) {
    %c0_i32 = arith.constant 0 : i32
    %c0_i32_0 = arith.constant 0 : i32
    return %c0_i32, %arg0 : i32, i32
  }
  func.func @transform_1(%arg0: i32) -> (i32, i32) {
    %c0_i32 = arith.constant 0 : i32
    %c0_i32_0 = arith.constant 0 : i32
    %c0_i32_1 = arith.constant 0 : i32
    return %c0_i32, %c0_i32_0 : i32, i32
  }
  func.func @transform_2(%arg0: i32) -> (i32, i32) {
    %c0_i32 = arith.constant 0 : i32
    %c0_i32_0 = arith.constant 0 : i32
    %c0_i32_1 = arith.constant 0 : i32
    return %c0_i32, %c0_i32_0 : i32, i32
  }
  func.func @transform_3(%arg0: i32) -> (i32, i32) {
    %c0_i32 = arith.constant 0 : i32
    %c0_i32_0 = arith.constant 0 : i32
    %c0_i32_1 = arith.constant 0 : i32
    return %c0_i32, %c0_i32_0 : i32, i32
  }
  func.func @transform_4(%arg0: i32) -> (i32, i32) {
    %c0_i32 = arith.constant 0 : i32
    %c0_i32_0 = arith.constant 0 : i32
    %c0_i32_1 = arith.constant 0 : i32
    return %c0_i32, %c0_i32_0 : i32, i32
  }
  func.func @transform_5(%arg0: i32) -> (i32, i32) {
    %c0_i32 = arith.constant 0 : i32
    %c0_i32_0 = arith.constant 0 : i32
    %c0_i32_1 = arith.constant 0 : i32
    return %c0_i32, %c0_i32_0 : i32, i32
  }
  func.func @transform_6(%arg0: i32) -> (i32, i32) {
    %c0_i32 = arith.constant 0 : i32
    %c0_i32_0 = arith.constant 0 : i32
    %c0_i32_1 = arith.constant 0 : i32
    return %c0_i32, %c0_i32_0 : i32, i32
  }
  func.func @transform_7(%arg0: i32) -> (i32, i32) {
    %c0_i32 = arith.constant 0 : i32
    %c0_i32_0 = arith.constant 0 : i32
    %c0_i32_1 = arith.constant 0 : i32
    return %c0_i32, %c0_i32_0 : i32, i32
  }
  func.func @transform_8(%arg0: i32) -> (i32, i32) {
    %c0_i32 = arith.constant 0 : i32
    %c0_i32_0 = arith.constant 0 : i32
    %c0_i32_1 = arith.constant 0 : i32
    return %c0_i32, %c0_i32_0 : i32, i32
  }
  func.func @transform_9(%arg0: i32) -> (i32, i32) {
    %c0_i32 = arith.constant 0 : i32
    %c0_i32_0 = arith.constant 0 : i32
    return %c0_i32, %arg0 : i32, i32
  }
}

</mosaic_0001>

<llo_original>
// kernel: tpu_custom_call.1
$region0: #{tpu_custom_call.1}
  #allocation0 [shape = 'u32[]', space=smem, size = 0x4, offset = 0x4, fixed_abs, tag = 'smem constant byte address 0x4 - core index']
  #allocation1 [shape = 'u32[72,128]{1,0:T(1,128)}', space=vmem, size = 0x9000, scoped, tag = 'internal scratch']
  %s0 = inlined_call_operand.vmem [shape: f32[4,128], index: 0, kind: input, shape index: {}]
  %s1 = inlined_call_operand.vmem [shape: f32[20,4], index: 1, kind: input, shape index: {}]
  %s2 = inlined_call_operand.vmem [shape: f32[20,1], index: 2, kind: input, shape index: {}]
  %s3 = inlined_call_operand.vmem [shape: f32[20,20], index: 3, kind: input, shape index: {}]
  %s4 = inlined_call_operand.vmem [shape: f32[20,1], index: 4, kind: input, shape index: {}]
  %s5 = inlined_call_operand.vmem [shape: f32[20,20], index: 5, kind: input, shape index: {}]
  %s6 = inlined_call_operand.vmem [shape: f32[20,1], index: 6, kind: input, shape index: {}]
  %s7 = inlined_call_operand.vmem [shape: f32[2,20], index: 7, kind: input, shape index: {}]
  %s8 = inlined_call_operand.vmem [shape: f32[2,1], index: 8, kind: input, shape index: {}]
  %s9 = inlined_call_operand.hbm [shape: f32[2,128], index: 9, kind: output, shape index: {}]
  %s10 = sld [smem:[#allocation0]]
  $region46: #{tpu_custom_call.1} parent=0
    _
  %s12 = ssub.s32 1, %s10
  %s13 = scalar_select 0, %s12, %s10
  $region1: #{tpu_custom_call.1} parent=0
    #allocation2 [shape = 'u8[1024]{0}', space=vmem, size = 0x400, scoped, tag = 'output window, operand 0, single buffered']
    #allocation3 [shape = 's32[1]{0}', space=sflag, size = 0x4, scoped, tag = 'scoped memory for tpu_custom_call.1']
    %14 = vsyncpa [#allocation3], 0
    // Predicated region
    $region2: #{tpu_custom_call.1} parent=1 // pred_check
      _
    $region3: #{tpu_custom_call.1} parent=1 // pred_check_branch
      %16 = sbr.rel (0) target = $region5
    $region4: #{tpu_custom_call.1} parent=1 // pred_region
      _
    $region5: #{tpu_custom_call.1} parent=1 // pred_fallthru
      _
    // Predicated region
    $region6: #{tpu_custom_call.1} parent=1 // pred_check
      _
    $region7: #{tpu_custom_call.1} parent=1 // pred_check_branch
      %18 = sbr.rel (0) target = $region9
    $region8: #{tpu_custom_call.1} parent=1 // pred_region
      _
    $region9: #{tpu_custom_call.1} parent=1 // pred_fallthru
      _
    // Predicated region
    $region10: #{tpu_custom_call.1} parent=1 // pred_check
      _
    $region11: #{tpu_custom_call.1} parent=1 // pred_check_branch
      %20 = sbr.rel (0) target = $region13
    $region12: #{tpu_custom_call.1} parent=1 // pred_region
      _
    $region13: #{tpu_custom_call.1} parent=1 // pred_fallthru
      _
    // Predicated region
    $region14: #{tpu_custom_call.1} parent=1 // pred_check
      _
    $region15: #{tpu_custom_call.1} parent=1 // pred_check_branch
      %22 = sbr.rel (0) target = $region17
    $region16: #{tpu_custom_call.1} parent=1 // pred_region
      _
    $region17: #{tpu_custom_call.1} parent=1 // pred_fallthru
      _
    // Predicated region
    $region18: #{tpu_custom_call.1} parent=1 // pred_check
      _
    $region19: #{tpu_custom_call.1} parent=1 // pred_check_branch
      %24 = sbr.rel (0) target = $region21
    $region20: #{tpu_custom_call.1} parent=1 // pred_region
      _
    $region21: #{tpu_custom_call.1} parent=1 // pred_fallthru
      _
    // Predicated region
    $region22: #{tpu_custom_call.1} parent=1 // pred_check
      _
    $region23: #{tpu_custom_call.1} parent=1 // pred_check_branch
      %26 = sbr.rel (0) target = $region25
    $region24: #{tpu_custom_call.1} parent=1 // pred_region
      _
    $region25: #{tpu_custom_call.1} parent=1 // pred_fallthru
      _
    // Predicated region
    $region26: #{tpu_custom_call.1} parent=1 // pred_check
      _
    $region27: #{tpu_custom_call.1} parent=1 // pred_check_branch
      %28 = sbr.rel (0) target = $region29
    $region28: #{tpu_custom_call.1} parent=1 // pred_region
      _
    $region29: #{tpu_custom_call.1} parent=1 // pred_fallthru
      _
    // Predicated region
    $region30: #{tpu_custom_call.1} parent=1 // pred_check
      _
    $region31: #{tpu_custom_call.1} parent=1 // pred_check_branch
      %30 = sbr.rel (0) target = $region33
    $region32: #{tpu_custom_call.1} parent=1 // pred_region
      _
    $region33: #{tpu_custom_call.1} parent=1 // pred_fallthru
      _
    // Predicated region
    $region34: #{tpu_custom_call.1} parent=1 // pred_check
      _
    $region35: #{tpu_custom_call.1} parent=1 // pred_check_branch
      %32 = sbr.rel (0) target = $region37
    $region36: #{tpu_custom_call.1} parent=1 // pred_region
      _
    $region37: #{tpu_custom_call.1} parent=1 // pred_fallthru
      _
    %v33 = vld [vmem:[%s0] sm:$0xf]
    %v34 = vld [vmem:[%s1] sm:$0xff]
    %v35 = vld [vmem:[%s1 + $0x8] sm:$0xff]
    %v36 = vld [vmem:[%s1 + $0x10] sm:$0xf]
    %v37 = vld [vmem:[%s2] sm:$0xff]
    %v38 = vld [vmem:[%s2 + $0x8] sm:$0xff]
    %v39 = vld [vmem:[%s2 + $0x10] sm:$0xf]
    %41 = vset.pattern.permute.xlu0 0
    %42 = vperm.xlu0 %41, %v37
    %v43 = vpop.permute.xlu0 %42
    %46 = vset.pattern.permute.xlu0 0
    %47 = vperm.xlu0 %46, %v38
    %v48 = vpop.permute.xlu0 %47
    %51 = vset.pattern.permute.xlu0 0
    %52 = vperm.xlu0 %51, %v39
    %v53 = vpop.permute.xlu0 %52
    %vm55 = vcmask 31744
    %v57 = vsel %vm55, %v34, 0
    %v60 = vsel %vm55, %v35, 0
    %v63 = vsel %vm55, %v36, 0
    %vm65 = vcmask 1043456
    %v67 = vsel %vm65, %v33, 0
    %69 = vmatpush.msra.mxu0 0.0
    %70 = vmatpush.msra.mxu0 0.0
    %71 = vmatpush.msra.mxu0 0.0
    %72 = vmatpush.msra.mxu0 0.0
    %73 = vmatpush.msra.mxu0 0.0
    %74 = vmatpush.msra.mxu0 0.0
    %75 = vmatpush.msra.mxu0 0.0
    %76 = vmatpush.msra.mxu0 0.0
    %77 = vmatpush.msra.mxu0 0.0
    %78 = vmatpush.msra.mxu0 0.0
    %79 = vmatpush.msra.mxu0 0.0
    %80 = vmatpush.msra.mxu0 0.0
    %81 = vmatpush.msra.mxu0 0.0
    %82 = vmatpush.msra.mxu0 0.0
    %83 = vmatpush.msra.mxu0 0.0
    %84 = vmatpush.msra.mxu0 %v67
    %85 = vmatmul.f32.gmra.mxu0 %v57
    %v86 = vpop.f32.mrf.mxu0
    %v87 = vadd.f32 %v43, %v86
    %88 = vmatmul.f32.gmra.mxu0 %v60
    %v89 = vpop.f32.mrf.mxu0
    %v90 = vadd.f32 %v48, %v89
    %91 = vmatmul.f32.gmra.mxu0 %v63
    %v92 = vpop.f32.mrf.mxu0
    %v93 = vadd.f32 %v53, %v92
    %94 = vdwg.mxu0
    %v95 = vmax.f32 %v87, 0.0
    %v96 = vmax.f32 %v90, 0.0
    %v97 = vmax.f32 %v93, 0.0
    %v98 = vld [vmem:[%s3] sm:$0xff]
    %v99 = vld [vmem:[%s3 + $0x8] sm:$0xff]
    %v100 = vld [vmem:[%s3 + $0x10] sm:$0xf]
    %v101 = vld [vmem:[%s4] sm:$0xff]
    %v102 = vld [vmem:[%s4 + $0x8] sm:$0xff]
    %v103 = vld [vmem:[%s4 + $0x10] sm:$0xf]
    %105 = vset.pattern.permute.xlu0 0
    %106 = vperm.xlu0 %105, %v101
    %v107 = vpop.permute.xlu0 %106
    %110 = vset.pattern.permute.xlu0 0
    %111 = vperm.xlu0 %110, %v102
    %v112 = vpop.permute.xlu0 %111
    %115 = vset.pattern.permute.xlu0 0
    %116 = vperm.xlu0 %115, %v103
    %v117 = vpop.permute.xlu0 %116
    %vm119 = vcmask 162816
    %v121 = vsel %vm119, %v98, 0
    %v124 = vsel %vm119, %v99, 0
    %v127 = vsel %vm119, %v100, 0
    %v130 = vsel %vm65, %v97, 0
    %132 = vmatpush.msra.mxu0 0.0
    %133 = vmatpush.msra.mxu0 0.0
    %134 = vmatpush.msra.mxu0 0.0
    %135 = vmatpush.msra.mxu0 0.0
    %136 = vmatpush.msra.mxu0 0.0
    %137 = vmatpush.msra.mxu0 0.0
    %138 = vmatpush.msra.mxu0 0.0
    %139 = vmatpush.msra.mxu0 0.0
    %140 = vmatpush.msra.mxu0 0.0
    %141 = vmatpush.msra.mxu0 0.0
    %142 = vmatpush.msra.mxu0 0.0
    %143 = vmatpush.msra.mxu0 0.0
    %144 = vmatpush.msra.mxu0 0.0
    %145 = vmatpush.msra.mxu0 %v130
    %146 = vmatpush.msra.mxu0 %v96
    %147 = vmatpush.msra.mxu0 %v95
    %148 = vmatmul.f32.gmra.mxu0 %v121
    %v149 = vpop.f32.mrf.mxu0
    %v150 = vadd.f32 %v107, %v149
    %151 = vmatmul.f32.gmra.mxu0 %v124
    %v152 = vpop.f32.mrf.mxu0
    %v153 = vadd.f32 %v112, %v152
    %154 = vmatmul.f32.gmra.mxu0 %v127
    %v155 = vpop.f32.mrf.mxu0
    %v156 = vadd.f32 %v117, %v155
    %157 = vdwg.mxu0
    %v158 = vmax.f32 %v150, 0.0
    %v159 = vmax.f32 %v153, 0.0
    %v160 = vmax.f32 %v156, 0.0
    %v161 = vld [vmem:[%s5] sm:$0xff]
    %v162 = vld [vmem:[%s5 + $0x8] sm:$0xff]
    %v163 = vld [vmem:[%s5 + $0x10] sm:$0xf]
    %v164 = vld [vmem:[%s6] sm:$0xff]
    %v165 = vld [vmem:[%s6 + $0x8] sm:$0xff]
    %v166 = vld [vmem:[%s6 + $0x10] sm:$0xf]
    %168 = vset.pattern.permute.xlu0 0
    %169 = vperm.xlu0 %168, %v164
    %v170 = vpop.permute.xlu0 %169
    %173 = vset.pattern.permute.xlu0 0
    %174 = vperm.xlu0 %173, %v165
    %v175 = vpop.permute.xlu0 %174
    %178 = vset.pattern.permute.xlu0 0
    %179 = vperm.xlu0 %178, %v166
    %v180 = vpop.permute.xlu0 %179
    %v183 = vsel %vm119, %v161, 0
    %v186 = vsel %vm119, %v162, 0
    %v189 = vsel %vm119, %v163, 0
    %v192 = vsel %vm65, %v160, 0
    %194 = vmatpush.msra.mxu0 0.0
    %195 = vmatpush.msra.mxu0 0.0
    %196 = vmatpush.msra.mxu0 0.0
    %197 = vmatpush.msra.mxu0 0.0
    %198 = vmatpush.msra.mxu0 0.0
    %199 = vmatpush.msra.mxu0 0.0
    %200 = vmatpush.msra.mxu0 0.0
    %201 = vmatpush.msra.mxu0 0.0
    %202 = vmatpush.msra.mxu0 0.0
    %203 = vmatpush.msra.mxu0 0.0
    %204 = vmatpush.msra.mxu0 0.0
    %205 = vmatpush.msra.mxu0 0.0
    %206 = vmatpush.msra.mxu0 0.0
    %207 = vmatpush.msra.mxu0 %v192
    %208 = vmatpush.msra.mxu0 %v159
    %209 = vmatpush.msra.mxu0 %v158
    %210 = vmatmul.f32.gmra.mxu0 %v183
    %v211 = vpop.f32.mrf.mxu0
    %v212 = vadd.f32 %v170, %v211
    %213 = vmatmul.f32.gmra.mxu0 %v186
    %v214 = vpop.f32.mrf.mxu0
    %v215 = vadd.f32 %v175, %v214
    %216 = vmatmul.f32.gmra.mxu0 %v189
    %v217 = vpop.f32.mrf.mxu0
    %v218 = vadd.f32 %v180, %v217
    %219 = vdwg.mxu0
    %v220 = vmax.f32 %v212, 0.0
    %v221 = vmax.f32 %v215, 0.0
    %v222 = vmax.f32 %v218, 0.0
    %v223 = vld [vmem:[%s7] sm:$0x3]
    %v224 = vld [vmem:[%s8] sm:$0x3]
    %226 = vset.pattern.permute.xlu0 0
    %227 = vperm.xlu0 %226, %v224
    %v228 = vpop.permute.xlu0 %227
    %v231 = vsel %vm119, %v223, 0
    %v234 = vsel %vm65, %v222, 0
    %236 = vmatpush.msra.mxu0 0.0
    %237 = vmatpush.msra.mxu0 0.0
    %238 = vmatpush.msra.mxu0 0.0
    %239 = vmatpush.msra.mxu0 0.0
    %240 = vmatpush.msra.mxu0 0.0
    %241 = vmatpush.msra.mxu0 0.0
    %242 = vmatpush.msra.mxu0 0.0
    %243 = vmatpush.msra.mxu0 0.0
    %244 = vmatpush.msra.mxu0 0.0
    %245 = vmatpush.msra.mxu0 0.0
    %246 = vmatpush.msra.mxu0 0.0
    %247 = vmatpush.msra.mxu0 0.0
    %248 = vmatpush.msra.mxu0 0.0
    %249 = vmatpush.msra.mxu0 %v234
    %250 = vmatpush.msra.mxu0 %v221
    %251 = vmatpush.msra.mxu0 %v220
    %252 = vmatmul.f32.gmra.mxu0 %v231
    %v253 = vpop.f32.mrf.mxu0
    %v254 = vadd.f32 %v228, %v253
    %255 = vdwg.mxu0
    %v257 = vrot.slane %v254, 1
    %v259 = vmax.f32 %v254, %v257
    %v260 = vsub.f32 %v254, %v259
    %v261 = vmul.f32 %v260, 1.442695
    %v262 = vpow.pop %v261
    %v264 = vrot.slane %v259, 7
    %v266 = vsub.f32 %v254, %v264
    %v267 = vmul.f32 %v266, 1.442695
    %v268 = vpow.pop %v267
    %v270 = vrot.slane %v268, 1
    %v272 = vadd.f32 %v262, %v270
    %v273 = vlog2.pop %v272
    %v274 = vmul.f32 %v273, 0.6931472
    %v275 = vadd.f32 %v259, %v274
    %v276 = vperm.slane %v275, 0
    %v277 = vsub.f32 %v254, %v276
    %278 = vst [vmem:[#allocation2] sm:$0x3] %v277
    // Predicated region
    $region38: #{tpu_custom_call.1} parent=1 // pred_check
      _
    $region39: #{tpu_custom_call.1} parent=1 // pred_check_branch
      %280 = sbr.rel (0) target = $region41
    $region40: #{tpu_custom_call.1} parent=1 // pred_region
      %282 = vsyncadd [#allocation3], 0
      %s284 = sshll.u32 [#allocation2], 4
      %s285 = int_to_ptr.vmem [resolvable:$true] %s284
      %s286 = sshll.u32 %s9, 4
      %s287 = int_to_ptr.hbm [resolvable:$true] %s286
      %289 = dma.vmem_to_hbm [thread:$0]  %s285, 32, %s287, [#allocation3]
    $region41: #{tpu_custom_call.1} parent=1 // pred_fallthru
      _
    // Predicated region
    $region42: #{tpu_custom_call.1} parent=1 // pred_check
      _
    $region43: #{tpu_custom_call.1} parent=1 // pred_check_branch
      %291 = sbr.rel (0) target = $region45
    $region44: #{tpu_custom_call.1} parent=1 // pred_region
      %293 = dma.done [#allocation3], 32
    $region45: #{tpu_custom_call.1} parent=1 // pred_fallthru
      _
    %294 = vsyncpa [#allocation3], 1

</llo_original>
